<compile_context>
chip_gen: v6e
topology: v6e:2x2x1
jax: 0.10.0
libtpu: 0.0.40
codegen_flags: <defaults>
</compile_context>

<pallas_src>
import functools

import jax
import jax.numpy as jnp
from jax import lax
from jax.experimental import pallas as pl
from jax.experimental.pallas import tpu as pltpu


def _conv_bn_lrelu_kernel(wt_ref, patch_ref, g_ref, bt_ref, o_ref, *,
                          n_imgs, HW, eps, slope):
    """Single-step fused conv + BN(train) + LeakyReLU.

    wt_ref    : (Cout, Kpad)  bf16 weight-stationary im2col weights
    patch_ref : (Kpad, M)     bf16 im2col patches, M = n_imgs*HO*WO (lane axis)
    g_ref     : (Cout, 1)     f32 BN gamma
    bt_ref    : (Cout, 1)     f32 BN beta
    o_ref     : (n_imgs, Cout, HW) f32 output (contiguous NCHW view)
    """
    # One MXU matmul: (Cout, Kpad) x (Kpad, M) -> (Cout, M), f32 accumulate.
    conv = jnp.dot(wt_ref[...], patch_ref[...],
                   preferred_element_type=jnp.float32)

    # Training-mode batch statistics over (N, H, W) per channel, i.e. over the
    # lane axis of the channel-major tile.  Centered (two-pass) variance.
    inv_m = 1.0 / float(n_imgs * HW)
    mean = jnp.sum(conv, axis=1, keepdims=True) * inv_m            # (Cout, 1)
    centered = conv - mean
    var = jnp.sum(centered * centered, axis=1, keepdims=True) * inv_m

    scale = lax.rsqrt(var + eps) * g_ref[...]                      # (Cout, 1)
    y = centered * scale + bt_ref[...]
    y = jnp.where(y > 0.0, y, slope * y)                           # LeakyReLU

    # Per-image channel-major stores; HW is a multiple of 128 here, so each
    # lane slice is vreg-aligned and the stores are full-lane vst.
    for n in range(n_imgs):
        o_ref[n] = y[:, n * HW:(n + 1) * HW]


def conv_block(x_nchw, w_oihw, bias, gamma, beta, *, pad, dil,
               eps=1e-5, slope=0.01):
    """Pallas ConvBlock forward. x_nchw: (N, Cin, H, W); w_oihw: (Cout, Cin, KH, KW)."""
    # The conv bias is exactly cancelled by training-mode BN (mean subtraction
    # + shift-invariant variance), so it is intentionally not used.
    del bias

    N, Cin, H, W = x_nchw.shape
    Cout, _, KH, KW = w_oihw.shape
    HO = H + 2 * pad - dil * (KH - 1)
    WO = W + 2 * pad - dil * (KW - 1)
    HW = HO * WO
    M = N * HW
    K = KH * KW * Cin
    Kpad = ((K + 127) // 128) * 128          # align contraction axis

    # ---- one-time im2col in the wrapper (fused by XLA, lane-dense LHS) ------
    x = jnp.transpose(x_nchw, (0, 2, 3, 1))                        # NHWC
    x_pad = jnp.pad(x, ((0, 0), (pad, pad), (pad, pad), (0, 0)))
    cols = []
    for kh in range(KH):
        for kw in range(KW):
            cols.append(lax.slice(
                x_pad,
                (0, kh * dil, kw * dil, 0),
                (N, kh * dil + HO, kw * dil + WO, Cin)))           # (N,HO,WO,Cin)
    patch = jnp.concatenate(cols, axis=-1).reshape(M, K)           # cols=(kh,kw,cin)
    patch = jnp.pad(patch, ((0, 0), (0, Kpad - K)))
    patch_t = patch.T.astype(jnp.bfloat16)                         # (Kpad, M)

    # Weight-stationary im2col weights, column order (kh, kw, cin).
    wt = jnp.transpose(w_oihw, (0, 2, 3, 1)).reshape(Cout, K)
    wt = jnp.pad(wt, ((0, 0), (0, Kpad - K))).astype(jnp.bfloat16)  # (Cout, Kpad)

    g2 = gamma.reshape(Cout, 1).astype(jnp.float32)
    b2 = beta.reshape(Cout, 1).astype(jnp.float32)

    kernel = functools.partial(_conv_bn_lrelu_kernel,
                               n_imgs=N, HW=HW, eps=eps, slope=slope)

    cost = pl.CostEstimate(
        flops=2 * Cout * Kpad * M,
        transcendentals=Cout,                                       # rsqrt
        bytes_accessed=(wt.size * 2 + patch_t.size * 2
                        + (g2.size + b2.size) * 4 + N * Cout * HW * 4))

    out3d = pl.pallas_call(
        kernel,
        out_shape=jax.ShapeDtypeStruct((N, Cout, HW), jnp.float32),
        grid=(1,),
        in_specs=[
            pl.BlockSpec((Cout, Kpad), lambda i: (0, 0)),
            pl.BlockSpec((Kpad, M), lambda i: (0, 0)),
            pl.BlockSpec((Cout, 1), lambda i: (0, 0)),
            pl.BlockSpec((Cout, 1), lambda i: (0, 0)),
        ],
        out_specs=pl.BlockSpec((N, Cout, HW), lambda i: (0, 0, 0)),
        compiler_params=pltpu.CompilerParams(
            dimension_semantics=("arbitrary",),
            vmem_limit_bytes=32 * 1024 * 1024),
        cost_estimate=cost,
    )(wt, patch_t, g2, b2)

    # Contiguous NCHW view -- no transpose needed.
    return out3d.reshape(N, Cout, HO, WO)


def _reference(x_nchw, w_oihw, bias, gamma, beta, *, pad, dil,
               eps=1e-5, slope=0.01):
    """Pure-JAX reference matching PyTorch ConvBlock forward (training-mode BN)."""
    conv = lax.conv_general_dilated(
        x_nchw, w_oihw, window_strides=(1, 1),
        padding=((pad, pad), (pad, pad)),
        rhs_dilation=(dil, dil),
        dimension_numbers=("NCHW", "OIHW", "NCHW"))
    conv = conv + bias.reshape(1, -1, 1, 1)
    mean = jnp.mean(conv, axis=(0, 2, 3), keepdims=True)
    var = jnp.mean((conv - mean) ** 2, axis=(0, 2, 3), keepdims=True)
    y = (conv - mean) * lax.rsqrt(var + eps)
    y = y * gamma.reshape(1, -1, 1, 1) + beta.reshape(1, -1, 1, 1)
    return jnp.where(y > 0, y, slope * y)


if __name__ == "__main__":
    # ConvBlock(in_ch=8, out_ch=16, k_size=3, pad=2, dil=2)
    in_ch, out_ch, k_size, pad, dil = 8, 16, 3, 2, 2
    N, H, W = 2, 16, 16

    key = jax.random.PRNGKey(0)
    kx, kw, kb, kg, kbt = jax.random.split(key, 5)
    x = jax.random.normal(kx, (N, in_ch, H, W), jnp.float32)
    weight = 0.1 * jax.random.normal(kw, (out_ch, in_ch, k_size, k_size), jnp.float32)
    bias = 0.1 * jax.random.normal(kb, (out_ch,), jnp.float32)
    gamma = 1.0 + 0.1 * jax.random.normal(kg, (out_ch,), jnp.float32)
    beta = 0.1 * jax.random.normal(kbt, (out_ch,), jnp.float32)

    fwd = jax.jit(functools.partial(conv_block, pad=pad, dil=dil))
    out = jax.block_until_ready(fwd(x, weight, bias, gamma, beta))

    ref = _reference(x, weight, bias, gamma, beta, pad=pad, dil=dil)
    assert out.shape == ref.shape, (out.shape, ref.shape)
    max_err = float(jnp.max(jnp.abs(out - ref)))
    assert jnp.allclose(out, ref, rtol=2e-2, atol=2e-2), max_err

    print("KERNEL_OK")
</pallas_src>

<mosaic_0001>
module attributes {stable_mosaic.version = 11 : i64} {
  func.func @_conv_bn_lrelu_kernel(%arg0: i32, %arg1: memref<16x128xbf16, #tpu.memory_space<vmem>>, %arg2: memref<128x512xbf16, #tpu.memory_space<vmem>>, %arg3: memref<16x1xf32, #tpu.memory_space<vmem>>, %arg4: memref<16x1xf32, #tpu.memory_space<vmem>>, %arg5: memref<2x16x256xf32, #tpu.memory_space<vmem>>) attributes {dimension_semantics = [#tpu.dimension_semantics<arbitrary>], iteration_bounds = array<i64: 1>, scalar_prefetch = 0 : i64, scratch_operands = 0 : i64, tpu.core_type = #tpu.core_type<tc>, window_params = [{pipeline_mode = #tpu.pipeline_mode<synchronous>, transform_indices = @transform_0, window_bounds = array<i64: 16, 128>}, {pipeline_mode = #tpu.pipeline_mode<synchronous>, transform_indices = @transform_1, window_bounds = array<i64: 128, 512>}, {pipeline_mode = #tpu.pipeline_mode<synchronous>, transform_indices = @transform_2, window_bounds = array<i64: 16, 1>}, {pipeline_mode = #tpu.pipeline_mode<synchronous>, transform_indices = @transform_3, window_bounds = array<i64: 16, 1>}, {pipeline_mode = #tpu.pipeline_mode<synchronous>, transform_indices = @transform_4, window_bounds = array<i64: 2, 16, 256>}]} {
    %c0 = arith.constant 0 : index
    %c0_0 = arith.constant 0 : index
    %0 = vector.load %arg1[%c0, %c0_0] : memref<16x128xbf16, #tpu.memory_space<vmem>>, vector<16x128xbf16>
    %c0_1 = arith.constant 0 : index
    %c0_2 = arith.constant 0 : index
    %1 = vector.load %arg2[%c0_1, %c0_2] : memref<128x512xbf16, #tpu.memory_space<vmem>>, vector<128x512xbf16>
    %cst = arith.constant dense<0.000000e+00> : vector<16x512xf32>
    %2 = tpu.matmul %0, %1, %cst {dimension_numbers = #tpu.dot_dimension_numbers<[1], [0], [0], [1], [0, 0, 1, 1], [], []>} : vector<16x128xbf16>, vector<128x512xbf16>, vector<16x512xf32> -> vector<16x512xf32>
    %cst_3 = arith.constant dense<0.000000e+00> : vector<16xf32>
    %3 = vector.multi_reduction <add>, %2, %cst_3 [1] : vector<16x512xf32> to vector<16xf32>
    %4 = vector.shape_cast %3 : vector<16xf32> to vector<16x1xf32>
    %cst_4 = arith.constant 0.001953125 : f32
    %5 = vector.broadcast %cst_4 : f32 to vector<16x1xf32>
    %6 = arith.mulf %4, %5 : vector<16x1xf32>
    %7 = vector.broadcast %6 : vector<16x1xf32> to vector<16x512xf32>
    %8 = arith.subf %2, %7 : vector<16x512xf32>
    %9 = arith.mulf %8, %8 : vector<16x512xf32>
    %cst_5 = arith.constant dense<0.000000e+00> : vector<16xf32>
    %10 = vector.multi_reduction <add>, %9, %cst_5 [1] : vector<16x512xf32> to vector<16xf32>
    %11 = vector.shape_cast %10 : vector<16xf32> to vector<16x1xf32>
    %cst_6 = arith.constant 0.001953125 : f32
    %12 = vector.broadcast %cst_6 : f32 to vector<16x1xf32>
    %13 = arith.mulf %11, %12 : vector<16x1xf32>
    %cst_7 = arith.constant 9.99999974E-6 : f32
    %14 = vector.broadcast %cst_7 : f32 to vector<16x1xf32>
    %15 = arith.addf %13, %14 : vector<16x1xf32>
    %16 = math.rsqrt %15 : vector<16x1xf32>
    %c0_8 = arith.constant 0 : index
    %c0_9 = arith.constant 0 : index
    %17 = vector.load %arg3[%c0_8, %c0_9] : memref<16x1xf32, #tpu.memory_space<vmem>>, vector<16x1xf32>
    %18 = arith.mulf %16, %17 : vector<16x1xf32>
    %19 = vector.broadcast %18 : vector<16x1xf32> to vector<16x512xf32>
    %20 = arith.mulf %8, %19 : vector<16x512xf32>
    %c0_10 = arith.constant 0 : index
    %c0_11 = arith.constant 0 : index
    %21 = vector.load %arg4[%c0_10, %c0_11] : memref<16x1xf32, #tpu.memory_space<vmem>>, vector<16x1xf32>
    %22 = vector.broadcast %21 : vector<16x1xf32> to vector<16x512xf32>
    %23 = arith.addf %20, %22 : vector<16x512xf32>
    %cst_12 = arith.constant 0.000000e+00 : f32
    %24 = vector.broadcast %cst_12 : f32 to vector<16x512xf32>
    %25 = arith.cmpf ogt, %23, %24 : vector<16x512xf32>
    %cst_13 = arith.constant 0.00999999977 : f32
    %26 = vector.broadcast %cst_13 : f32 to vector<16x512xf32>
    %27 = arith.mulf %26, %23 : vector<16x512xf32>
    %28 = arith.select %25, %23, %27 : vector<16x512xi1>, vector<16x512xf32>
    %29 = vector.extract_strided_slice %28 {offsets = [0, 0], sizes = [16, 256], strides = [1, 1]} : vector<16x512xf32> to vector<16x256xf32>
    %c0_14 = arith.constant 0 : index
    %c0_15 = arith.constant 0 : index
    %c0_16 = arith.constant 0 : index
    %30 = vector.load %arg5[%c0_14, %c0_15, %c0_16] : memref<2x16x256xf32, #tpu.memory_space<vmem>>, vector<1x16x256xf32>
    %31 = vector.shape_cast %30 : vector<1x16x256xf32> to vector<16x256xf32>
    %32 = vector.shape_cast %29 : vector<16x256xf32> to vector<1x16x256xf32>
    tpu.vector_store %arg5[%c0_14, %c0_15, %c0_16], %32 {strides = array<i32>} : memref<2x16x256xf32, #tpu.memory_space<vmem>>, vector<1x16x256xf32>,
    %33 = vector.extract_strided_slice %28 {offsets = [0, 256], sizes = [16, 256], strides = [1, 1]} : vector<16x512xf32> to vector<16x256xf32>
    %c1 = arith.constant 1 : index
    %c0_17 = arith.constant 0 : index
    %c0_18 = arith.constant 0 : index
    %34 = vector.load %arg5[%c1, %c0_17, %c0_18] : memref<2x16x256xf32, #tpu.memory_space<vmem>>, vector<1x16x256xf32>
    %35 = vector.shape_cast %34 : vector<1x16x256xf32> to vector<16x256xf32>
    %36 = vector.shape_cast %33 : vector<16x256xf32> to vector<1x16x256xf32>
    tpu.vector_store %arg5[%c1, %c0_17, %c0_18], %36 {strides = array<i32>} : memref<2x16x256xf32, #tpu.memory_space<vmem>>, vector<1x16x256xf32>,
    return
  }
  func.func @transform_0(%arg0: i32) -> (i32, i32) {
    %c0_i32 = arith.constant 0 : i32
    %c0_i32_0 = arith.constant 0 : i32
    %c0_i32_1 = arith.constant 0 : i32
    return %c0_i32, %c0_i32_0 : i32, i32
  }
  func.func @transform_1(%arg0: i32) -> (i32, i32) {
    %c0_i32 = arith.constant 0 : i32
    %c0_i32_0 = arith.constant 0 : i32
    %c0_i32_1 = arith.constant 0 : i32
    return %c0_i32, %c0_i32_0 : i32, i32
  }
  func.func @transform_2(%arg0: i32) -> (i32, i32) {
    %c0_i32 = arith.constant 0 : i32
    %c0_i32_0 = arith.constant 0 : i32
    %c0_i32_1 = arith.constant 0 : i32
    return %c0_i32, %c0_i32_0 : i32, i32
  }
  func.func @transform_3(%arg0: i32) -> (i32, i32) {
    %c0_i32 = arith.constant 0 : i32
    %c0_i32_0 = arith.constant 0 : i32
    %c0_i32_1 = arith.constant 0 : i32
    return %c0_i32, %c0_i32_0 : i32, i32
  }
  func.func @transform_4(%arg0: i32) -> (i32, i32, i32) {
    %c0_i32 = arith.constant 0 : i32
    %c0_i32_0 = arith.constant 0 : i32
    %c0_i32_1 = arith.constant 0 : i32
    %c0_i32_2 = arith.constant 0 : i32
    return %c0_i32, %c0_i32_0, %c0_i32_1 : i32, i32, i32
  }
}

</mosaic_0001>

<llo_original>
// kernel: conv_block.1
$region0: #{conv_block.1}
  #allocation0 [shape = 'u32[]', space=smem, size = 0x4, offset = 0x4, fixed_abs, tag = 'smem constant byte address 0x4 - core index']
  #allocation1 [shape = 'u32[144,128]{1,0:T(1,128)}', space=vmem, size = 0x12000, scoped, tag = 'internal scratch']
  %s0 = inlined_call_operand.vmem [shape: bf16[16,128], index: 0, kind: input, shape index: {}]
  %s1 = inlined_call_operand.vmem [shape: bf16[128,512], index: 1, kind: input, shape index: {}]
  %s2 = inlined_call_operand.vmem [shape: f32[16,1], index: 2, kind: input, shape index: {}]
  %s3 = inlined_call_operand.vmem [shape: f32[16,1], index: 3, kind: input, shape index: {}]
  %s4 = inlined_call_operand.vmem [shape: f32[2,16,256], index: 4, kind: output, shape index: {}]
  %s5 = sld [smem:[#allocation0]]
  $region26: #{conv_block.1} parent=0
    _
  %s7 = ssub.s32 1, %s5
  %s8 = scalar_select 0, %s7, %s5
  // Predicated region
  $region2: #{conv_block.1} parent=0 // pred_check
    _
  $region3: #{conv_block.1} parent=0 // pred_check_branch
    %10 = sbr.rel (0) target = $region5
  $region4: #{conv_block.1} parent=0 // pred_region
    _
  $region5: #{conv_block.1} parent=0 // pred_fallthru
    _
  // Predicated region
  $region6: #{conv_block.1} parent=0 // pred_check
    _
  $region7: #{conv_block.1} parent=0 // pred_check_branch
    %12 = sbr.rel (0) target = $region9
  $region8: #{conv_block.1} parent=0 // pred_region
    _
  $region9: #{conv_block.1} parent=0 // pred_fallthru
    _
  // Predicated region
  $region10: #{conv_block.1} parent=0 // pred_check
    _
  $region11: #{conv_block.1} parent=0 // pred_check_branch
    %14 = sbr.rel (0) target = $region13
  $region12: #{conv_block.1} parent=0 // pred_region
    _
  $region13: #{conv_block.1} parent=0 // pred_fallthru
    _
  // Predicated region
  $region14: #{conv_block.1} parent=0 // pred_check
    _
  $region15: #{conv_block.1} parent=0 // pred_check_branch
    %16 = sbr.rel (0) target = $region17
  $region16: #{conv_block.1} parent=0 // pred_region
    _
  $region17: #{conv_block.1} parent=0 // pred_fallthru
    _
  %v18 = vld [vmem:[%s0] sm:$0xf]
  %v19 = vld [vmem:[%s0 + $0x4] sm:$0xf]
  %v20 = vld [vmem:[%s1] sm:$0xff]
  %v21 = vld [vmem:[%s1 + $0x8] sm:$0xff]
  %v22 = vld [vmem:[%s1 + $0x10] sm:$0xff]
  %v23 = vld [vmem:[%s1 + $0x18] sm:$0xff]
  %v24 = vld [vmem:[%s1 + $0x20] sm:$0xff]
  %v25 = vld [vmem:[%s1 + $0x28] sm:$0xff]
  %v26 = vld [vmem:[%s1 + $0x30] sm:$0xff]
  %v27 = vld [vmem:[%s1 + $0x38] sm:$0xff]
  %v28 = vld [vmem:[%s1 + $0x40] sm:$0xff]
  %v29 = vld [vmem:[%s1 + $0x48] sm:$0xff]
  %v30 = vld [vmem:[%s1 + $0x50] sm:$0xff]
  %v31 = vld [vmem:[%s1 + $0x58] sm:$0xff]
  %v32 = vld [vmem:[%s1 + $0x60] sm:$0xff]
  %v33 = vld [vmem:[%s1 + $0x68] sm:$0xff]
  %v34 = vld [vmem:[%s1 + $0x70] sm:$0xff]
  %v35 = vld [vmem:[%s1 + $0x78] sm:$0xff]
  %v36 = vld [vmem:[%s1 + $0x80] sm:$0xff]
  %v37 = vld [vmem:[%s1 + $0x88] sm:$0xff]
  %v38 = vld [vmem:[%s1 + $0x90] sm:$0xff]
  %v39 = vld [vmem:[%s1 + $0x98] sm:$0xff]
  %v40 = vld [vmem:[%s1 + $0xa0] sm:$0xff]
  %v41 = vld [vmem:[%s1 + $0xa8] sm:$0xff]
  %v42 = vld [vmem:[%s1 + $0xb0] sm:$0xff]
  %v43 = vld [vmem:[%s1 + $0xb8] sm:$0xff]
  %v44 = vld [vmem:[%s1 + $0xc0] sm:$0xff]
  %v45 = vld [vmem:[%s1 + $0xc8] sm:$0xff]
  %v46 = vld [vmem:[%s1 + $0xd0] sm:$0xff]
  %v47 = vld [vmem:[%s1 + $0xd8] sm:$0xff]
  %v48 = vld [vmem:[%s1 + $0xe0] sm:$0xff]
  %v49 = vld [vmem:[%s1 + $0xe8] sm:$0xff]
  %v50 = vld [vmem:[%s1 + $0xf0] sm:$0xff]
  %v51 = vld [vmem:[%s1 + $0xf8] sm:$0xff]
  %v54 = vunpack.c.l.b16 %v18
  %v55 = vunpack.c.l.b16 %v19
  %v56 = vpack.c.b16 %v55, %v54
  %v90 = vunpack.c.l.b16 %v20
  %v91 = vunpack.c.h.b16 %v20
  %v92 = vunpack.c.l.b16 %v21
  %v93 = vunpack.c.h.b16 %v21
  %v94 = vunpack.c.l.b16 %v22
  %v95 = vunpack.c.h.b16 %v22
  %v96 = vunpack.c.l.b16 %v23
  %v97 = vunpack.c.h.b16 %v23
  %v98 = vunpack.c.l.b16 %v24
  %v99 = vunpack.c.h.b16 %v24
  %v100 = vunpack.c.l.b16 %v25
  %v101 = vunpack.c.h.b16 %v25
  %v102 = vunpack.c.l.b16 %v26
  %v103 = vunpack.c.h.b16 %v26
  %v104 = vunpack.c.l.b16 %v27
  %v105 = vunpack.c.h.b16 %v27
  %v106 = vunpack.c.l.b16 %v28
  %v107 = vunpack.c.h.b16 %v28
  %v108 = vunpack.c.l.b16 %v29
  %v109 = vunpack.c.h.b16 %v29
  %v110 = vunpack.c.l.b16 %v30
  %v111 = vunpack.c.h.b16 %v30
  %v112 = vunpack.c.l.b16 %v31
  %v113 = vunpack.c.h.b16 %v31
  %v114 = vunpack.c.l.b16 %v32
  %v115 = vunpack.c.h.b16 %v32
  %v116 = vunpack.c.l.b16 %v33
  %v117 = vunpack.c.h.b16 %v33
  %v118 = vunpack.c.l.b16 %v34
  %v119 = vunpack.c.h.b16 %v34
  %v120 = vunpack.c.l.b16 %v35
  %v121 = vunpack.c.h.b16 %v35
  %v122 = vunpack.c.l.b16 %v36
  %v123 = vunpack.c.h.b16 %v36
  %v124 = vunpack.c.l.b16 %v37
  %v125 = vunpack.c.h.b16 %v37
  %v126 = vunpack.c.l.b16 %v38
  %v127 = vunpack.c.h.b16 %v38
  %v128 = vunpack.c.l.b16 %v39
  %v129 = vunpack.c.h.b16 %v39
  %v130 = vunpack.c.l.b16 %v40
  %v131 = vunpack.c.h.b16 %v40
  %v132 = vunpack.c.l.b16 %v41
  %v133 = vunpack.c.h.b16 %v41
  %v134 = vunpack.c.l.b16 %v42
  %v135 = vunpack.c.h.b16 %v42
  %v136 = vunpack.c.l.b16 %v43
  %v137 = vunpack.c.h.b16 %v43
  %v138 = vunpack.c.l.b16 %v44
  %v139 = vunpack.c.h.b16 %v44
  %v140 = vunpack.c.l.b16 %v45
  %v141 = vunpack.c.h.b16 %v45
  %v142 = vunpack.c.l.b16 %v46
  %v143 = vunpack.c.h.b16 %v46
  %v144 = vunpack.c.l.b16 %v47
  %v145 = vunpack.c.h.b16 %v47
  %v146 = vunpack.c.l.b16 %v48
  %v147 = vunpack.c.h.b16 %v48
  %v148 = vunpack.c.l.b16 %v49
  %v149 = vunpack.c.h.b16 %v49
  %v150 = vunpack.c.l.b16 %v50
  %v151 = vunpack.c.h.b16 %v50
  %v152 = vunpack.c.l.b16 %v51
  %v153 = vunpack.c.h.b16 %v51
  %v154 = vpack.c.b16 %v94, %v90
  %v155 = vpack.c.b16 %v95, %v91
  %v156 = vpack.c.b16 %v96, %v92
  %v157 = vpack.c.b16 %v97, %v93
  %v158 = vpack.c.b16 %v102, %v98
  %v159 = vpack.c.b16 %v103, %v99
  %v160 = vpack.c.b16 %v104, %v100
  %v161 = vpack.c.b16 %v105, %v101
  %v162 = vpack.c.b16 %v110, %v106
  %v163 = vpack.c.b16 %v111, %v107
  %v164 = vpack.c.b16 %v112, %v108
  %v165 = vpack.c.b16 %v113, %v109
  %v166 = vpack.c.b16 %v118, %v114
  %v167 = vpack.c.b16 %v119, %v115
  %v168 = vpack.c.b16 %v120, %v116
  %v169 = vpack.c.b16 %v121, %v117
  %v170 = vpack.c.b16 %v126, %v122
  %v171 = vpack.c.b16 %v127, %v123
  %v172 = vpack.c.b16 %v128, %v124
  %v173 = vpack.c.b16 %v129, %v125
  %v174 = vpack.c.b16 %v134, %v130
  %v175 = vpack.c.b16 %v135, %v131
  %v176 = vpack.c.b16 %v136, %v132
  %v177 = vpack.c.b16 %v137, %v133
  %v178 = vpack.c.b16 %v142, %v138
  %v179 = vpack.c.b16 %v143, %v139
  %v180 = vpack.c.b16 %v144, %v140
  %v181 = vpack.c.b16 %v145, %v141
  %v182 = vpack.c.b16 %v150, %v146
  %v183 = vpack.c.b16 %v151, %v147
  %v184 = vpack.c.b16 %v152, %v148
  %v185 = vpack.c.b16 %v153, %v149
  %218 = vmatprep.subr.bf16.mxu0 %v183
  %219 = vmatpush1.bf16.msra.mxu0 %v182
  %220 = vmatprep.subr.bf16.mxu0 %v179
  %221 = vmatpush1.bf16.msra.mxu0 %v178
  %222 = vmatprep.subr.bf16.mxu0 %v175
  %223 = vmatpush1.bf16.msra.mxu0 %v174
  %224 = vmatprep.subr.bf16.mxu0 %v171
  %225 = vmatpush1.bf16.msra.mxu0 %v170
  %226 = vmatprep.subr.bf16.mxu0 %v167
  %227 = vmatpush1.bf16.msra.mxu0 %v166
  %228 = vmatprep.subr.bf16.mxu0 %v163
  %229 = vmatpush1.bf16.msra.mxu0 %v162
  %230 = vmatprep.subr.bf16.mxu0 %v159
  %231 = vmatpush1.bf16.msra.mxu0 %v158
  %232 = vmatprep.subr.bf16.mxu0 %v155
  %233 = vmatpush1.bf16.msra.mxu0 %v154
  %234 = vmatprep.subr.bf16.mxu0 0
  %235 = vmatpush2.bf16.msra.mxu0 0
  %236 = vmatprep.subr.bf16.mxu0 0
  %237 = vmatpush2.bf16.msra.mxu0 0
  %238 = vmatprep.subr.bf16.mxu0 0
  %239 = vmatpush2.bf16.msra.mxu0 0
  %240 = vmatprep.subr.bf16.mxu0 0
  %241 = vmatpush2.bf16.msra.mxu0 0
  %242 = vmatprep.subr.bf16.mxu0 0
  %243 = vmatpush2.bf16.msra.mxu0 0
  %244 = vmatprep.subr.bf16.mxu0 0
  %245 = vmatpush2.bf16.msra.mxu0 0
  %246 = vmatprep.subr.bf16.mxu0 0
  %247 = vmatpush2.bf16.msra.mxu0 0
  %248 = vmatprep.subr.bf16.mxu0 0
  %249 = vmatpush2.bf16.msra.mxu0 0
  %250 = vmatprep.mubr.bf16.mxu0 0
  %251 = vmatmul.mubr.bf16.gmra.mxu0 %v56
  %v252 = vpop.f32.mrf.mxu0
  %v253 = vadd.f32 0.0, %v252
  %v254 = vpop.f32.mrf.mxu0
  %v255 = vadd.f32 0.0, %v254
  %v256 = vpop.f32.mrf.mxu0
  %v257 = vadd.f32 0.0, %v256
  %v258 = vpop.f32.mrf.mxu0
  %v259 = vadd.f32 0.0, %v258
  %260 = vdwg.mxu0
  %261 = vmatprep.subr.bf16.mxu0 %v185
  %262 = vmatpush1.bf16.msra.mxu0 %v184
  %263 = vmatprep.subr.bf16.mxu0 %v181
  %264 = vmatpush1.bf16.msra.mxu0 %v180
  %265 = vmatprep.subr.bf16.mxu0 %v177
  %266 = vmatpush1.bf16.msra.mxu0 %v176
  %267 = vmatprep.subr.bf16.mxu0 %v173
  %268 = vmatpush1.bf16.msra.mxu0 %v172
  %269 = vmatprep.subr.bf16.mxu0 %v169
  %270 = vmatpush1.bf16.msra.mxu0 %v168
  %271 = vmatprep.subr.bf16.mxu0 %v165
  %272 = vmatpush1.bf16.msra.mxu0 %v164
  %273 = vmatprep.subr.bf16.mxu0 %v161
  %274 = vmatpush1.bf16.msra.mxu0 %v160
  %275 = vmatprep.subr.bf16.mxu0 %v157
  %276 = vmatpush1.bf16.msra.mxu0 %v156
  %277 = vmatprep.subr.bf16.mxu0 0
  %278 = vmatpush2.bf16.msra.mxu0 0
  %279 = vmatprep.subr.bf16.mxu0 0
  %280 = vmatpush2.bf16.msra.mxu0 0
  %281 = vmatprep.subr.bf16.mxu0 0
  %282 = vmatpush2.bf16.msra.mxu0 0
  %283 = vmatprep.subr.bf16.mxu0 0
  %284 = vmatpush2.bf16.msra.mxu0 0
  %285 = vmatprep.subr.bf16.mxu0 0
  %286 = vmatpush2.bf16.msra.mxu0 0
  %287 = vmatprep.subr.bf16.mxu0 0
  %288 = vmatpush2.bf16.msra.mxu0 0
  %289 = vmatprep.subr.bf16.mxu0 0
  %290 = vmatpush2.bf16.msra.mxu0 0
  %291 = vmatprep.subr.bf16.mxu0 0
  %292 = vmatpush2.bf16.msra.mxu0 0
  %293 = vmatprep.mubr.bf16.mxu0 0
  %294 = vmatmul.mubr.bf16.gmra.mxu0 %v56
  %v295 = vpop.f32.mrf.mxu0
  %v296 = vadd.f32 0.0, %v295
  %v297 = vpop.f32.mrf.mxu0
  %v298 = vadd.f32 0.0, %v297
  %v299 = vpop.f32.mrf.mxu0
  %v300 = vadd.f32 0.0, %v299
  %v301 = vpop.f32.mrf.mxu0
  %v302 = vadd.f32 0.0, %v301
  %303 = vdwg.mxu0
  %v304 = vadd.f32 %v253, %v255
  %v305 = vadd.f32 %v304, %v296
  %v306 = vadd.f32 %v305, %v298
  %307 = vadd.xlane.f32.xlu0 %v306
  %v308 = vpop.xlane.xlu0 %307
  %v309 = vadd.f32 %v257, %v259
  %v310 = vadd.f32 %v309, %v300
  %v311 = vadd.f32 %v310, %v302
  %312 = vadd.xlane.f32.xlu0 %v311
  %v313 = vpop.xlane.xlu0 %312
  %v314 = vmul.f32 %v308, 0.001953125
  %v315 = vmul.f32 %v313, 0.001953125
  %v316 = vsub.f32 %v253, %v314
  %v317 = vsub.f32 %v255, %v314
  %v318 = vsub.f32 %v296, %v314
  %v319 = vsub.f32 %v298, %v314
  %v320 = vsub.f32 %v257, %v315
  %v321 = vsub.f32 %v259, %v315
  %v322 = vsub.f32 %v300, %v315
  %v323 = vsub.f32 %v302, %v315
  %v324 = vmul.f32 %v316, %v316
  %v325 = vmul.f32 %v317, %v317
  %v326 = vmul.f32 %v318, %v318
  %v327 = vmul.f32 %v319, %v319
  %v328 = vmul.f32 %v320, %v320
  %v329 = vmul.f32 %v321, %v321
  %v330 = vmul.f32 %v322, %v322
  %v331 = vmul.f32 %v323, %v323
  %v332 = vadd.f32 %v324, %v325
  %v333 = vadd.f32 %v332, %v326
  %v334 = vadd.f32 %v333, %v327
  %335 = vadd.xlane.f32.xlu0 %v334
  %v336 = vpop.xlane.xlu0 %335
  %v337 = vadd.f32 %v328, %v329
  %v338 = vadd.f32 %v337, %v330
  %v339 = vadd.f32 %v338, %v331
  %340 = vadd.xlane.f32.xlu0 %v339
  %v341 = vpop.xlane.xlu0 %340
  %v342 = vmul.f32 %v336, 0.001953125
  %v343 = vmul.f32 %v341, 0.001953125
  %v344 = vadd.f32 %v342, 1e-05
  %v345 = vadd.f32 %v343, 1e-05
  %v346 = vrsqrt.pop %v344
  %v347 = vrsqrt.pop %v345
  %v348 = vld [vmem:[%s2] sm:$0xff]
  %v349 = vld [vmem:[%s2 + $0x8] sm:$0xff]
  %v350 = vmul.f32 %v346, %v348
  %v351 = vmul.f32 %v347, %v349
  %353 = vset.pattern.permute.xlu0 0
  %354 = vperm.xlu0 %353, %v350
  %v355 = vpop.permute.xlu0 %354
  %358 = vset.pattern.permute.xlu0 0
  %359 = vperm.xlu0 %358, %v351
  %v360 = vpop.permute.xlu0 %359
  %v362 = vmul.f32 %v316, %v355
  %v363 = vmul.f32 %v317, %v355
  %v364 = vmul.f32 %v318, %v355
  %v365 = vmul.f32 %v319, %v355
  %v366 = vmul.f32 %v320, %v360
  %v367 = vmul.f32 %v321, %v360
  %v368 = vmul.f32 %v322, %v360
  %v369 = vmul.f32 %v323, %v360
  %v370 = vld [vmem:[%s3] sm:$0xff]
  %v371 = vld [vmem:[%s3 + $0x8] sm:$0xff]
  %373 = vset.pattern.permute.xlu0 0
  %374 = vperm.xlu0 %373, %v370
  %v375 = vpop.permute.xlu0 %374
  %378 = vset.pattern.permute.xlu0 0
  %379 = vperm.xlu0 %378, %v371
  %v380 = vpop.permute.xlu0 %379
  %v382 = vadd.f32 %v362, %v375
  %v383 = vadd.f32 %v363, %v375
  %v384 = vadd.f32 %v364, %v375
  %v385 = vadd.f32 %v365, %v375
  %v386 = vadd.f32 %v366, %v380
  %v387 = vadd.f32 %v367, %v380
  %v388 = vadd.f32 %v368, %v380
  %v389 = vadd.f32 %v369, %v380
  %vm390 = vcmp.gt.f32.partialorder %v382, 0.0
  %vm391 = vcmp.gt.f32.partialorder %v383, 0.0
  %vm392 = vcmp.gt.f32.partialorder %v384, 0.0
  %vm393 = vcmp.gt.f32.partialorder %v385, 0.0
  %vm394 = vcmp.gt.f32.partialorder %v386, 0.0
  %vm395 = vcmp.gt.f32.partialorder %v387, 0.0
  %vm396 = vcmp.gt.f32.partialorder %v388, 0.0
  %vm397 = vcmp.gt.f32.partialorder %v389, 0.0
  %v398 = vmul.f32 %v382, 0.01
  %v399 = vmul.f32 %v383, 0.01
  %v400 = vmul.f32 %v384, 0.01
  %v401 = vmul.f32 %v385, 0.01
  %v402 = vmul.f32 %v386, 0.01
  %v403 = vmul.f32 %v387, 0.01
  %v404 = vmul.f32 %v388, 0.01
  %v405 = vmul.f32 %v389, 0.01
  %v406 = vsel %vm390, %v382, %v398
  %v407 = vsel %vm391, %v383, %v399
  %v408 = vsel %vm392, %v384, %v400
  %v409 = vsel %vm393, %v385, %v401
  %v410 = vsel %vm394, %v386, %v402
  %v411 = vsel %vm395, %v387, %v403
  %v412 = vsel %vm396, %v388, %v404
  %v413 = vsel %vm397, %v389, %v405
  %414 = vst [vmem:[%s4] sm:$0xff] %v406
  %415 = vst [vmem:[%s4 + $0x8] sm:$0xff] %v407
  %416 = vst [vmem:[%s4 + $0x10] sm:$0xff] %v410
  %417 = vst [vmem:[%s4 + $0x18] sm:$0xff] %v411
  %s418 = scalar_lea.vmem %s4, 32
  %419 = vst [vmem:[%s418] sm:$0xff] %v408
  %420 = vst [vmem:[%s418 + $0x8] sm:$0xff] %v409
  %421 = vst [vmem:[%s418 + $0x10] sm:$0xff] %v412
  %422 = vst [vmem:[%s418 + $0x18] sm:$0xff] %v413
  // Predicated region
  $region18: #{conv_block.1} parent=0 // pred_check
    _
  $region19: #{conv_block.1} parent=0 // pred_check_branch
    %424 = sbr.rel (0) target = $region21
  $region20: #{conv_block.1} parent=0 // pred_region
    _
  $region21: #{conv_block.1} parent=0 // pred_fallthru
    _
  // Predicated region
  $region22: #{conv_block.1} parent=0 // pred_check
    _
  $region23: #{conv_block.1} parent=0 // pred_check_branch
    %426 = sbr.rel (0) target = $region25
  $region24: #{conv_block.1} parent=0 // pred_region
    _
  $region25: #{conv_block.1} parent=0 // pred_fallthru
    _

</llo_original>
